<compile_context>
chip_gen: v7x
topology: tpu7x:2x2x1
jax: 0.10.0
libtpu: 0.0.40
codegen_flags: <defaults>
</compile_context>

<pallas_src>
import functools

import numpy as np
import jax
import jax.numpy as jnp
from jax.experimental import pallas as pl
from jax.experimental.pallas import tpu as pltpu

EPS = 1e-12                       # F.normalize default eps
_VMEM_LIMIT = 32 * 1024 * 1024    # safe scoped-VMEM bound on v5e/v6e/v7x


# --------------------------------------------------------------------------
# Kernel 1: per-batch L2-normalize over channels + cosine-similarity matmul.
#           Batch axis is a "parallel" grid dimension (no accumulator).
# --------------------------------------------------------------------------
def _sim_kernel(mxu_bf16, x_ref, r_ref, nx_ref, nr_ref, sim_ref):
    x = x_ref[0]            # (C, L1)  channels on the sublane axis
    r = r_ref[0]            # (C, L2)
    # F.normalize over channels: x / max(||x||, eps).  Only the (1, L) norm
    # row is divided; the broadcast over (C, L) is a multiply.
    inv_x = 1.0 / jnp.maximum(jnp.sqrt(jnp.sum(x * x, axis=0, keepdims=True)), EPS)
    inv_r = 1.0 / jnp.maximum(jnp.sqrt(jnp.sum(r * r, axis=0, keepdims=True)), EPS)
    nx_t = jnp.transpose(x * inv_x)    # (L1, C) -- PyTorch normalized_x layout
    nr = r * inv_r                     # (C, L2) -- PyTorch normalized_ref layout
    nx_ref[0] = nx_t
    nr_ref[0] = nr
    if mxu_bf16:
        # Optional MXU-native operands (v6e/v7x); comparisons downstream stay
        # on the f32 matmul result.  Off by default to preserve f32 semantics.
        a, b = nx_t.astype(jnp.bfloat16), nr.astype(jnp.bfloat16)
    else:
        a, b = nx_t, nr
    sim_ref[0] = jax.lax.dot_general(
        a, b, (((1,), (0,)), ((), ())), preferred_element_type=jnp.float32)


def compute_sim_mats(x_ncl, r_ncl, mxu_bf16=False):
    # x_ncl: (N, C, L1), r_ncl: (N, C, L2)
    N, C, L1 = x_ncl.shape
    _, _, L2 = r_ncl.shape
    kernel = functools.partial(_sim_kernel, mxu_bf16)
    out_shapes = (
        jax.ShapeDtypeStruct((N, L1, C), jnp.float32),    # normalized_x
        jax.ShapeDtypeStruct((N, C, L2), jnp.float32),    # normalized_ref
        jax.ShapeDtypeStruct((N, L1, L2), jnp.float32),   # per-batch sim_mat
    )
    # TODO(synk): for large L1/L2 add L-tiling to this grid (reduction axis
    # last) so the per-step block stays inside v7x's smaller VMEM.
    grid_spec = pltpu.PrefetchScalarGridSpec(
        num_scalar_prefetch=0,
        grid=(N,),
        in_specs=[
            pl.BlockSpec((1, C, L1), lambda b: (b, 0, 0)),
            pl.BlockSpec((1, C, L2), lambda b: (b, 0, 0)),
        ],
        out_specs=[
            pl.BlockSpec((1, L1, C), lambda b: (b, 0, 0)),
            pl.BlockSpec((1, C, L2), lambda b: (b, 0, 0)),
            pl.BlockSpec((1, L1, L2), lambda b: (b, 0, 0)),
        ],
    )
    return pl.pallas_call(
        kernel,
        out_shape=out_shapes,
        grid_spec=grid_spec,
        compiler_params=pltpu.CompilerParams(
            dimension_semantics=("parallel",),
            vmem_limit_bytes=_VMEM_LIMIT),
    )(x_ncl, r_ncl)


# --------------------------------------------------------------------------
# Kernel 2 (fused): batch mean, zone / pairwise distances, zoned similarity,
#                   and BOTH associate() passes (top-1, NMS re-score, top-2,
#                   validity mask), with lane-dense (3, Lq) outputs.
# --------------------------------------------------------------------------
def _assoc_colwise(s_t, pxc, pyc, t_nms):
    """Associate with queries on the lane axis.

    s_t : (Lr, Lq) similarities (references on the sublane axis)
    pxc, pyc : (Lr, 1) reference keypoint coordinates
    Returns (bi, v0, m), each (1, Lq): top-1 ref index, NMS-masked top-1 sim,
    validity mask -- all lane-dense.
    """
    Lr, _ = s_t.shape
    row = jax.lax.broadcasted_iota(jnp.int32, s_t.shape, 0)

    # top-1 index (first occurrence of the max, matching torch.topk)
    vmax = jnp.max(s_t, axis=0, keepdims=True)
    bi = jnp.min(jnp.where(s_t == vmax, row, Lr), axis=0, keepdims=True)

    # gather the selected reference keypoint via one-hot (single 1.0 per col)
    onehot = (row == bi).astype(jnp.float32)
    ref_x = jnp.sum(onehot * pxc, axis=0, keepdims=True)   # (1, Lq)
    ref_y = jnp.sum(onehot * pyc, axis=0, keepdims=True)

    # d_temp, same formula/ordering as the PyTorch code
    ref_sq = ref_x * ref_x + ref_y * ref_y                 # (1, Lq)
    p_sq = pxc * pxc + pyc * pyc                           # (Lr, 1)
    cross = ref_x * pxc + ref_y * pyc                      # (Lr, Lq)
    d_temp = jnp.abs((ref_sq + p_sq) - 2.0 * cross)

    mask_nms = jnp.logical_or(d_temp >= t_nms, d_temp == 0.0)
    masked = s_t * mask_nms.astype(s_t.dtype)

    # top-2 values of the NMS-masked similarities
    v0 = jnp.max(masked, axis=0, keepdims=True)
    a0 = jnp.min(jnp.where(masked == v0, row, Lr), axis=0, keepdims=True)
    masked2 = jnp.where(row == a0, -jnp.inf, masked)
    v1 = jnp.max(masked2, axis=0, keepdims=True)

    m = jnp.logical_and(v1 < v0 * 0.995, v0 > 0.75)
    return bi, v0, m


def _zone_assoc_kernel(n_batch, t_zone, t_nms,
                       sim_ref, fkp1_ref, fkp2_ref, fkp2t_ref,
                       sim12_ref, sim21_ref, d_ref, a12_ref, a21_ref):
    # Mean over the (static) batch axis -- unrolled adds of (L1, L2) slices.
    acc = sim_ref[0]
    for i in range(1, n_batch):
        acc = acc + sim_ref[i]
    sim12 = acc * (1.0 / n_batch)              # (L1, L2)
    sim12_ref[...] = sim12
    sim21_ref[...] = jnp.transpose(sim12)      # (L2, L1) in-kernel transpose

    # Zone: pairwise squared distances between the two keypoint sets.
    p1x = fkp1_ref[:, 0:1]
    p1y = fkp1_ref[:, 1:2]                     # (L1, 1)
    p2x = fkp2t_ref[0:1, :]
    p2y = fkp2t_ref[1:2, :]                    # (1, L2)
    d = jnp.abs((p1x * p1x + p1y * p1y) + (p2x * p2x + p2y * p2y)
                - 2.0 * (p1x * p2x + p1y * p2y))
    d_ref[...] = d
    zone = (d < t_zone).astype(jnp.float32)
    zoned12 = sim12 * zone                     # (L1, L2)
    zoned21 = jnp.transpose(zoned12)           # (L2, L1), stays in VMEM

    # associate(zoned12, fkp2): queries = L1 (lanes), references = L2.
    bi, v0, m = _assoc_colwise(zoned21, fkp2_ref[:, 0:1], fkp2_ref[:, 1:2], t_nms)
    a12_ref[0:1, :] = bi.astype(jnp.float32)
    a12_ref[1:2, :] = v0
    a12_ref[2:3, :] = m.astype(jnp.float32)

    # associate(zoned21, fkp1): queries = L2 (lanes), references = L1.
    bi, v0, m = _assoc_colwise(zoned12, fkp1_ref[:, 0:1], fkp1_ref[:, 1:2], t_nms)
    a21_ref[0:1, :] = bi.astype(jnp.float32)
    a21_ref[1:2, :] = v0
    a21_ref[2:3, :] = m.astype(jnp.float32)


def zone_associate(sim_b, fkp1, fkp2, fkp2_t, t_zone, t_nms):
    N, L1, L2 = sim_b.shape
    kernel = functools.partial(_zone_assoc_kernel, N, t_zone, t_nms)
    out_shapes = (
        jax.ShapeDtypeStruct((L1, L2), jnp.float32),   # mean sim_mat_12
        jax.ShapeDtypeStruct((L2, L1), jnp.float32),   # sim_mat_21
        jax.ShapeDtypeStruct((L1, L2), jnp.float32),   # d (zone distances)
        jax.ShapeDtypeStruct((3, L1), jnp.float32),    # [idx; sim; mask] side 12
        jax.ShapeDtypeStruct((3, L2), jnp.float32),    # [idx; sim; mask] side 21
    )
    return pl.pallas_call(
        kernel,
        out_shape=out_shapes,
        grid=(1,),
        in_specs=[
            pl.BlockSpec((N, L1, L2), lambda i: (0, 0, 0)),
            pl.BlockSpec((L1, 2), lambda i: (0, 0)),
            pl.BlockSpec((L2, 2), lambda i: (0, 0)),
            pl.BlockSpec((2, L2), lambda i: (0, 0)),
        ],
        out_specs=[
            pl.BlockSpec((L1, L2), lambda i: (0, 0)),
            pl.BlockSpec((L2, L1), lambda i: (0, 0)),
            pl.BlockSpec((L1, L2), lambda i: (0, 0)),
            pl.BlockSpec((3, L1), lambda i: (0, 0)),
            pl.BlockSpec((3, L2), lambda i: (0, 0)),
        ],
        compiler_params=pltpu.CompilerParams(vmem_limit_bytes=_VMEM_LIMIT),
    )(sim_b, fkp1, fkp2, fkp2_t)


# --------------------------------------------------------------------------
# Forward wrapper (mirrors AssociationLoss.forward)
# --------------------------------------------------------------------------
def association_loss_forward(x1, x2, fkp1, fkp2, img_size=512, mxu_bf16=False):
    # x1, x2: (N, C, H, W) float32; fkp1: (1,1,H*W,2); fkp2: (1,1,H2*W2,2)
    N, C, H, W = x1.shape
    _, _, H2, W2 = x2.shape
    L1, L2 = H * W, H2 * W2
    t_zone = 0.028 ** 2 * img_size ** 2 * 2
    t_nms = 0.004 ** 2 * img_size ** 2 * 2

    # Pure reshapes (no XLA transpose): feed (N, C, L) directly.
    x1_ncl = x1.reshape(N, C, L1).astype(jnp.float32)
    x2_ncl = x2.reshape(N, C, L2).astype(jnp.float32)

    normalized_x, normalized_ref, sim_mat = compute_sim_mats(x1_ncl, x2_ncl, mxu_bf16)

    f1 = fkp1.reshape(L1, 2).astype(jnp.float32)
    f2 = fkp2.reshape(L2, 2).astype(jnp.float32)
    f2_t = jnp.transpose(f2)                   # tiny (2, L2) helper

    sim12, sim21, d2d, a12, a21 = zone_associate(sim_mat, f1, f2, f2_t,
                                                 t_zone, t_nms)
    sim_mat_12 = sim12[None]                   # (1, L1, L2)
    sim_mat_21 = sim21[None]                   # (1, L2, L1)
    mask_zone = (d2d < t_zone)[None, None]     # (1, 1, L1, L2) bool
    d = d2d[None, None]

    # Unpack lane-dense associate slabs into the PyTorch-shaped tensors.
    mid_indices = a12[0].astype(jnp.int32).reshape(1, L1, 1)   # torch uses int64
    associated_sim = a12[1].reshape(1, L1, 1)
    mask12 = (a12[2] > 0.5).reshape(1, L1, 1)
    max_indices = a21[0].astype(jnp.int32).reshape(1, L2, 1)
    max_sim = a21[1].reshape(1, L2, 1)
    mask21 = (a21[2] > 0.5).reshape(1, L2, 1)

    # ---- cycle-consistency: data-dependent shapes (topk with k=mask.sum(),
    # masked_select) have no static Pallas/JAX form, so this stays on host,
    # but with a SINGLE batched device->host transfer.
    # TODO(synk): torch.topk tie-ordering among equal 0/1 mask values is
    # implementation-defined; we use ascending index of the True entries.
    # The module's debug print()/pdb side effects are intentionally omitted.
    mid_np, max_np, m12_np, m21_np = jax.device_get(
        (mid_indices, max_indices, mask12, mask21))

    index = np.nonzero(m12_np[0, :, 0])[0].astype(np.int32).reshape(1, -1, 1)
    index2 = np.nonzero(m21_np[0, :, 0])[0].astype(np.int32).reshape(1, -1, 1)

    mid_indices_valid = mid_np[:, index[0, :, 0], :]       # (1, k12, 1)
    max_indices_valid = max_np[:, index2[0, :, 0], :]      # (1, k21, 1)

    tbl21 = (max_np + 1) * (m21_np.astype(np.int32) * 2 - 1) - 1
    tbl12 = (mid_np + 1) * (m12_np.astype(np.int32) * 2 - 1) - 1
    indices = np.take_along_axis(tbl21, mid_indices_valid, axis=1)
    indices2 = np.take_along_axis(tbl12, max_indices_valid, axis=1)

    cyc_mask = (index == indices)
    cyc_mask2 = (index2 == indices2)
    index_valid = index[cyc_mask]
    index_valid2 = index2[cyc_mask2]

    return (jnp.asarray(indices), max_indices, mid_indices,
            jnp.asarray(index_valid), jnp.asarray(index_valid2),
            sim_mat_12, sim_mat_21, mask_zone, normalized_x, normalized_ref,
            d, mask12, associated_sim, max_sim, sim_mat)


if __name__ == "__main__":
    key = jax.random.PRNGKey(0)
    N, C, H, W = 2, 32, 8, 8
    H2, W2 = 8, 8
    img_size = 512

    k1, k2, k3, k4 = jax.random.split(key, 4)
    x1 = jax.random.normal(k1, (N, C, H, W), dtype=jnp.float32)
    x2 = jax.random.normal(k2, (N, C, H2, W2), dtype=jnp.float32)

    def grid_kps(h, w, k):
        ys, xs = jnp.meshgrid(jnp.arange(h, dtype=jnp.float32),
                              jnp.arange(w, dtype=jnp.float32), indexing="ij")
        g = jnp.stack([xs.reshape(-1), ys.reshape(-1)], axis=-1) * (img_size / h)
        return (g + 2.0 * jax.random.normal(k, g.shape, dtype=jnp.float32))[None, None]

    fkp1 = grid_kps(H, W, k3)      # (1, 1, H*W, 2)
    fkp2 = grid_kps(H2, W2, k4)    # (1, 1, H2*W2, 2)

    outs = association_loss_forward(x1, x2, fkp1, fkp2, img_size=img_size)
    jax.block_until_ready(outs)
    print("KERNEL_OK")
</pallas_src>

<mosaic_0001>
module attributes {stable_mosaic.version = 11 : i64} {
  func.func @_sim_kernel(%arg0: i32, %arg1: memref<1x32x64xf32, #tpu.memory_space<vmem>>, %arg2: memref<1x32x64xf32, #tpu.memory_space<vmem>>, %arg3: memref<1x64x32xf32, #tpu.memory_space<vmem>>, %arg4: memref<1x32x64xf32, #tpu.memory_space<vmem>>, %arg5: memref<1x64x64xf32, #tpu.memory_space<vmem>>) attributes {dimension_semantics = [#tpu.dimension_semantics<parallel>], iteration_bounds = array<i64: 2>, scalar_prefetch = 0 : i64, scratch_operands = 0 : i64, tpu.core_type = #tpu.core_type<tc>, window_params = [{transform_indices = @transform_0, window_bounds = array<i64: 1, 32, 64>}, {transform_indices = @transform_1, window_bounds = array<i64: 1, 32, 64>}, {transform_indices = @transform_2, window_bounds = array<i64: 1, 64, 32>}, {transform_indices = @transform_3, window_bounds = array<i64: 1, 32, 64>}, {transform_indices = @transform_4, window_bounds = array<i64: 1, 64, 64>}]} {
    %c0 = arith.constant 0 : index
    %c0_0 = arith.constant 0 : index
    %c0_1 = arith.constant 0 : index
    %0 = vector.load %arg1[%c0, %c0_0, %c0_1] : memref<1x32x64xf32, #tpu.memory_space<vmem>>, vector<1x32x64xf32>
    %1 = vector.shape_cast %0 : vector<1x32x64xf32> to vector<32x64xf32>
    %c0_2 = arith.constant 0 : index
    %c0_3 = arith.constant 0 : index
    %c0_4 = arith.constant 0 : index
    %2 = vector.load %arg2[%c0_2, %c0_3, %c0_4] : memref<1x32x64xf32, #tpu.memory_space<vmem>>, vector<1x32x64xf32>
    %3 = vector.shape_cast %2 : vector<1x32x64xf32> to vector<32x64xf32>
    %4 = arith.mulf %1, %1 : vector<32x64xf32>
    %cst = arith.constant dense<0.000000e+00> : vector<64xf32>
    %5 = vector.multi_reduction <add>, %4, %cst [0] : vector<32x64xf32> to vector<64xf32>
    %6 = vector.shape_cast %5 : vector<64xf32> to vector<1x64xf32>
    %7 = math.sqrt %6 : vector<1x64xf32>
    %cst_5 = arith.constant 9.99999996E-13 : f32
    %8 = vector.broadcast %cst_5 : f32 to vector<1x64xf32>
    %9 = arith.maximumf %7, %8 : vector<1x64xf32>
    %cst_6 = arith.constant 1.000000e+00 : f32
    %10 = vector.broadcast %cst_6 : f32 to vector<1x64xf32>
    %11 = arith.divf %10, %9 : vector<1x64xf32>
    %12 = arith.mulf %3, %3 : vector<32x64xf32>
    %cst_7 = arith.constant dense<0.000000e+00> : vector<64xf32>
    %13 = vector.multi_reduction <add>, %12, %cst_7 [0] : vector<32x64xf32> to vector<64xf32>
    %14 = vector.shape_cast %13 : vector<64xf32> to vector<1x64xf32>
    %15 = math.sqrt %14 : vector<1x64xf32>
    %cst_8 = arith.constant 9.99999996E-13 : f32
    %16 = vector.broadcast %cst_8 : f32 to vector<1x64xf32>
    %17 = arith.maximumf %15, %16 : vector<1x64xf32>
    %cst_9 = arith.constant 1.000000e+00 : f32
    %18 = vector.broadcast %cst_9 : f32 to vector<1x64xf32>
    %19 = arith.divf %18, %17 : vector<1x64xf32>
    %20 = vector.broadcast %11 : vector<1x64xf32> to vector<32x64xf32>
    %21 = arith.mulf %1, %20 : vector<32x64xf32>
    %22 = tpu.transpose %21, [1, 0] : vector<32x64xf32> -> vector<64x32xf32>
    %23 = vector.broadcast %19 : vector<1x64xf32> to vector<32x64xf32>
    %24 = arith.mulf %3, %23 : vector<32x64xf32>
    %c0_10 = arith.constant 0 : index
    %c0_11 = arith.constant 0 : index
    %c0_12 = arith.constant 0 : index
    %25 = vector.load %arg3[%c0_10, %c0_11, %c0_12] : memref<1x64x32xf32, #tpu.memory_space<vmem>>, vector<1x64x32xf32>
    %26 = vector.shape_cast %25 : vector<1x64x32xf32> to vector<64x32xf32>
    %27 = vector.shape_cast %22 : vector<64x32xf32> to vector<1x64x32xf32>
    tpu.vector_store %arg3[%c0_10, %c0_11, %c0_12], %27 {strides = array<i32>} : memref<1x64x32xf32, #tpu.memory_space<vmem>>, vector<1x64x32xf32>,
    %c0_13 = arith.constant 0 : index
    %c0_14 = arith.constant 0 : index
    %c0_15 = arith.constant 0 : index
    %28 = vector.load %arg4[%c0_13, %c0_14, %c0_15] : memref<1x32x64xf32, #tpu.memory_space<vmem>>, vector<1x32x64xf32>
    %29 = vector.shape_cast %28 : vector<1x32x64xf32> to vector<32x64xf32>
    %30 = vector.shape_cast %24 : vector<32x64xf32> to vector<1x32x64xf32>
    tpu.vector_store %arg4[%c0_13, %c0_14, %c0_15], %30 {strides = array<i32>} : memref<1x32x64xf32, #tpu.memory_space<vmem>>, vector<1x32x64xf32>,
    %cst_16 = arith.constant dense<0.000000e+00> : vector<64x64xf32>
    %31 = tpu.matmul %22, %24, %cst_16 {dimension_numbers = #tpu.dot_dimension_numbers<[1], [0], [0], [1], [0, 0, 1, 1], [], []>} : vector<64x32xf32>, vector<32x64xf32>, vector<64x64xf32> -> vector<64x64xf32>
    %c0_17 = arith.constant 0 : index
    %c0_18 = arith.constant 0 : index
    %c0_19 = arith.constant 0 : index
    %32 = vector.load %arg5[%c0_17, %c0_18, %c0_19] : memref<1x64x64xf32, #tpu.memory_space<vmem>>, vector<1x64x64xf32>
    %33 = vector.shape_cast %32 : vector<1x64x64xf32> to vector<64x64xf32>
    %34 = vector.shape_cast %31 : vector<64x64xf32> to vector<1x64x64xf32>
    tpu.vector_store %arg5[%c0_17, %c0_18, %c0_19], %34 {strides = array<i32>} : memref<1x64x64xf32, #tpu.memory_space<vmem>>, vector<1x64x64xf32>,
    return
  }
  func.func @transform_0(%arg0: i32) -> (i32, i32, i32) {
    %c0_i32 = arith.constant 0 : i32
    %c0_i32_0 = arith.constant 0 : i32
    %c0_i32_1 = arith.constant 0 : i32
    return %arg0, %c0_i32, %c0_i32_0 : i32, i32, i32
  }
  func.func @transform_1(%arg0: i32) -> (i32, i32, i32) {
    %c0_i32 = arith.constant 0 : i32
    %c0_i32_0 = arith.constant 0 : i32
    %c0_i32_1 = arith.constant 0 : i32
    return %arg0, %c0_i32, %c0_i32_0 : i32, i32, i32
  }
  func.func @transform_2(%arg0: i32) -> (i32, i32, i32) {
    %c0_i32 = arith.constant 0 : i32
    %c0_i32_0 = arith.constant 0 : i32
    %c0_i32_1 = arith.constant 0 : i32
    return %arg0, %c0_i32, %c0_i32_0 : i32, i32, i32
  }
  func.func @transform_3(%arg0: i32) -> (i32, i32, i32) {
    %c0_i32 = arith.constant 0 : i32
    %c0_i32_0 = arith.constant 0 : i32
    %c0_i32_1 = arith.constant 0 : i32
    return %arg0, %c0_i32, %c0_i32_0 : i32, i32, i32
  }
  func.func @transform_4(%arg0: i32) -> (i32, i32, i32) {
    %c0_i32 = arith.constant 0 : i32
    %c0_i32_0 = arith.constant 0 : i32
    %c0_i32_1 = arith.constant 0 : i32
    return %arg0, %c0_i32, %c0_i32_0 : i32, i32, i32
  }
}

</mosaic_0001>

<llo_original>
// kernel: tpu_custom_call.1
$region0: #{tpu_custom_call.1}
  #allocation0 [shape = 'u32[]', space=smem, size = 0x4, offset = 0x4, fixed_abs, tag = 'smem constant byte address 0x4 - core index']
  #allocation1 [shape = 'u32[144,128]{1,0:T(1,128)}', space=vmem, size = 0x12000, scoped, tag = 'internal scratch']
  %s0 = inlined_call_operand.hbm [shape: f32[2,32,64], index: 0, kind: input, shape index: {}]
  %s1 = inlined_call_operand.hbm [shape: f32[2,32,64], index: 1, kind: input, shape index: {}]
  %s2 = inlined_call_operand.vmem [shape: f32[2,64,32], index: 2, kind: output, shape index: {0}]
  %s3 = inlined_call_operand.hbm [shape: f32[2,32,64], index: 3, kind: output, shape index: {1}]
  %s4 = inlined_call_operand.hbm [shape: f32[2,64,64], index: 4, kind: output, shape index: {2}]
  %5 = xla_tuple %s2, %s3, %s4
  %s6 = sld [smem:[#allocation0]]
  $region65: #{tpu_custom_call.1} parent=0
    _
  %s8 = ssub.s32 1, %s6
  %s9 = scalar_select 0, %s8, %s6
  $region1: #{tpu_custom_call.1} parent=0
    #allocation2 [shape = 'u8[32768]{0}', space=vmem, size = 0x8000, scoped, tag = 'input window, operand 0']
    #allocation3 [shape = 's32[2]{0}', space=sflag, size = 0x8, scoped, tag = 'scoped memory for tpu_custom_call.1']
    #allocation4 [shape = 's32[2]{0}', space=sflag, size = 0x8, scoped, tag = 'scoped memory for tpu_custom_call.1']
    #allocation5 [shape = 'u8[32768]{0}', space=vmem, size = 0x8000, scoped, tag = 'input window, operand 1']
    #allocation6 [shape = 's32[2]{0}', space=sflag, size = 0x8, scoped, tag = 'scoped memory for tpu_custom_call.1']
    #allocation7 [shape = 'u8[32768]{0}', space=vmem, size = 0x8000, scoped, tag = 'output window, operand 1']
    #allocation8 [shape = 'u8[65536]{0}', space=vmem, size = 0x10000, scoped, tag = 'output window, operand 2']
    #allocation9 [shape = 's32[2]{0}', space=sflag, size = 0x8, scoped, tag = 'scoped memory for tpu_custom_call.1']
    %10 = vsyncpa [#allocation3], 0
    %s11 = scalar_lea.sflag [#allocation3], 1
    %12 = vsyncpa %s11, 0
    %13 = vsyncpa [#allocation6], 0
    %s14 = scalar_lea.sflag [#allocation6], 1
    %15 = vsyncpa %s14, 0
    %16 = vsyncpa [#allocation4], 0
    %s17 = scalar_lea.sflag [#allocation4], 1
    %18 = vsyncpa %s17, 0
    %19 = vsyncpa [#allocation9], 0
    %s20 = scalar_lea.sflag [#allocation9], 1
    %21 = vsyncpa %s20, 0
    loop: start=0, step=1, limit=4
    $region2: #{tpu_custom_call.1} parent=1 // loop_pre_header
      _
    $region3: #{tpu_custom_call.1} parent=1 // loop_header
      %s23 = sphi 0, %s27
      %p24 = scmp.ge.s32.totalorder %s23, 4
      %s33 = sphi 0, %s35
      %s36 = sphi 0, %s33
      %s37 = sphi 0, %s36
      %s53 = sphi 0, %s37
      %s59 = sphi 0, %s61
      %s62 = sphi 0, %s59
      %s63 = sphi 0, %s62
      %s79 = sphi 0, %s63
      %s85 = sphi 0, %s87
      %s88 = sphi 0, %s85
      %s89 = sphi 0, %s88
      %s105 = sphi 0, %s89
      %s111 = sphi 0, %s113
      %s114 = sphi 0, %s111
      %s115 = sphi 0, %s114
      %s131 = sphi 0, %s115
      %s137 = sphi 0, %s139
      %s140 = sphi 0, %s137
      %s141 = sphi 0, %s140
      %s157 = sphi 0, %s141
    $region4: #{tpu_custom_call.1} parent=1 // loop_header_branch
      %26 = sbr.rel (%p24) target = $region8
    $region5: #{tpu_custom_call.1} parent=1 // loop_body
      %s28 = ssub.s32 %s23, 1
      %s29 = ssub.s32 %s23, 2
      %s30 = sadd.s32 %s23, 1
      %s31 = ssub.s32 %s23, %s30
      %p32 = scmp.eq.s32.totalorder %s31, 0
      %s34 = sadd.s32 %s33, 1
      %s35 = scalar_select %p32, %s33, %s34
      %p38 = pneg %p32
      %p39 = scmp.eq.s32.totalorder %s23, 1
      %p40 = por %p38, %p39
      %p41 = scmp.ne.s32.totalorder %s33, %s36
      %p42 = scmp.eq.s32.totalorder %s23, 0
      %p43 = por %p41, %p42
      %p44 = scmp.ne.s32.totalorder %s33, %s36
      %p45 = scmp.eq.s32.totalorder %s28, 1
      %p46 = por %p44, %p45
      %p47 = scmp.ne.s32.totalorder %s36, %s37
      %p48 = scmp.eq.s32.totalorder %s28, 0
      %p49 = por %p47, %p48
      %p50 = scmp.ne.s32.totalorder %s36, %s37
      %p51 = scmp.eq.s32.totalorder %s29, 1
      %p52 = por %p50, %p51
      %p54 = scmp.ne.s32.totalorder %s37, %s53
      %p55 = scmp.eq.s32.totalorder %s29, 0
      %p56 = por %p54, %p55
      %s57 = ssub.s32 %s23, %s30
      %p58 = scmp.eq.s32.totalorder %s57, 0
      %s60 = sadd.s32 %s59, 1
      %s61 = scalar_select %p58, %s59, %s60
      %p64 = pneg %p58
      %p65 = scmp.eq.s32.totalorder %s23, 1
      %p66 = por %p64, %p65
      %p67 = scmp.ne.s32.totalorder %s59, %s62
      %p68 = scmp.eq.s32.totalorder %s23, 0
      %p69 = por %p67, %p68
      %p70 = scmp.ne.s32.totalorder %s59, %s62
      %p71 = scmp.eq.s32.totalorder %s28, 1
      %p72 = por %p70, %p71
      %p73 = scmp.ne.s32.totalorder %s62, %s63
      %p74 = scmp.eq.s32.totalorder %s28, 0
      %p75 = por %p73, %p74
      %p76 = scmp.ne.s32.totalorder %s62, %s63
      %p77 = scmp.eq.s32.totalorder %s29, 1
      %p78 = por %p76, %p77
      %p80 = scmp.ne.s32.totalorder %s63, %s79
      %p81 = scmp.eq.s32.totalorder %s29, 0
      %p82 = por %p80, %p81
      %s83 = ssub.s32 %s23, %s30
      %p84 = scmp.eq.s32.totalorder %s83, 0
      %s86 = sadd.s32 %s85, 1
      %s87 = scalar_select %p84, %s85, %s86
      %p90 = pneg %p84
      %p91 = scmp.eq.s32.totalorder %s23, 1
      %p92 = por %p90, %p91
      %p93 = scmp.ne.s32.totalorder %s85, %s88
      %p94 = scmp.eq.s32.totalorder %s23, 0
      %p95 = por %p93, %p94
      %p96 = scmp.ne.s32.totalorder %s85, %s88
      %p97 = scmp.eq.s32.totalorder %s28, 1
      %p98 = por %p96, %p97
      %p99 = scmp.ne.s32.totalorder %s88, %s89
      %p100 = scmp.eq.s32.totalorder %s28, 0
      %p101 = por %p99, %p100
      %p102 = scmp.ne.s32.totalorder %s88, %s89
      %p103 = scmp.eq.s32.totalorder %s29, 1
      %p104 = por %p102, %p103
      %p106 = scmp.ne.s32.totalorder %s89, %s105
      %p107 = scmp.eq.s32.totalorder %s29, 0
      %p108 = por %p106, %p107
      %s109 = ssub.s32 %s23, %s30
      %p110 = scmp.eq.s32.totalorder %s109, 0
      %s112 = sadd.s32 %s111, 1
      %s113 = scalar_select %p110, %s111, %s112
      %p116 = pneg %p110
      %p117 = scmp.eq.s32.totalorder %s23, 1
      %p118 = por %p116, %p117
      %p119 = scmp.ne.s32.totalorder %s111, %s114
      %p120 = scmp.eq.s32.totalorder %s23, 0
      %p121 = por %p119, %p120
      %p122 = scmp.ne.s32.totalorder %s111, %s114
      %p123 = scmp.eq.s32.totalorder %s28, 1
      %p124 = por %p122, %p123
      %p125 = scmp.ne.s32.totalorder %s114, %s115
      %p126 = scmp.eq.s32.totalorder %s28, 0
      %p127 = por %p125, %p126
      %p128 = scmp.ne.s32.totalorder %s114, %s115
      %p129 = scmp.eq.s32.totalorder %s29, 1
      %p130 = por %p128, %p129
      %p132 = scmp.ne.s32.totalorder %s115, %s131
      %p133 = scmp.eq.s32.totalorder %s29, 0
      %p134 = por %p132, %p133
      %s135 = ssub.s32 %s23, %s30
      %p136 = scmp.eq.s32.totalorder %s135, 0
      %s138 = sadd.s32 %s137, 1
      %s139 = scalar_select %p136, %s137, %s138
      %p142 = pneg %p136
      %p143 = scmp.eq.s32.totalorder %s23, 1
      %p144 = por %p142, %p143
      %p145 = scmp.ne.s32.totalorder %s137, %s140
      %p146 = scmp.eq.s32.totalorder %s23, 0
      %p147 = por %p145, %p146
      %p148 = scmp.ne.s32.totalorder %s137, %s140
      %p149 = scmp.eq.s32.totalorder %s28, 1
      %p150 = por %p148, %p149
      %p151 = scmp.ne.s32.totalorder %s140, %s141
      %p152 = scmp.eq.s32.totalorder %s28, 0
      %p153 = por %p151, %p152
      %p154 = scmp.ne.s32.totalorder %s140, %s141
      %p155 = scmp.eq.s32.totalorder %s29, 1
      %p156 = por %p154, %p155
      %p158 = scmp.ne.s32.totalorder %s141, %s157
      %p159 = scmp.eq.s32.totalorder %s29, 0
      %p160 = por %p158, %p159
      %p161 = scmp.le.s32.totalorder 1, %s23
      %p162 = scmp.lt.s32.totalorder %s23, 3
      %p163 = pnand %p161, %p162
      %p164 = pneg %p163
      // Predicated region
      $region9: #{tpu_custom_call.1} parent=5 // pred_check
        _
      $region10: #{tpu_custom_call.1} parent=5 // pred_check_branch
        %166 = sbr.rel (%p163) target = $region12
      $region11: #{tpu_custom_call.1} parent=5 // pred_region
        %s167 = ssub.s32 %s23, 1
      $region12: #{tpu_custom_call.1} parent=5 // pred_fallthru
        _
      %p168 = scmp.lt.s32.totalorder %s23, 2
      // Predicated region
      $region13: #{tpu_custom_call.1} parent=5 // pred_check
        %p169 = pneg %p168
      $region14: #{tpu_custom_call.1} parent=5 // pred_check_branch
        %171 = sbr.rel (%p169) target = $region16
      $region15: #{tpu_custom_call.1} parent=5 // pred_region
        // Predicated region
        $region17: #{tpu_custom_call.1} parent=15 // pred_check
          %p172 = pneg %p43
        $region18: #{tpu_custom_call.1} parent=15 // pred_check_branch
          %174 = sbr.rel (%p172) target = $region20
        $region19: #{tpu_custom_call.1} parent=15 // pred_region
          %s175 = sand.u32 %s33, 1
          %s176 = scalar_lea.sflag [#allocation3], %s175
          %s177 = sand.u32 %s33, 1
          %s178 = smul.addr %s177, 32
          %s179 = scalar_lea.vmem [#allocation2], %s178
          %s181 = ssub.s32 512, 512
          %182 = vsyncadd %s176, %s181
          %s183 = smul.addr %s23, 4
          %s184 = smul.addr %s183, 128
          %s185 = scalar_lea.hbm %s0, %s184
          %s186 = sshll.u32 %s179, 4
          %s187 = int_to_ptr.vmem [resolvable:$true] %s186
          %192 = dma.hbm_to_vmem [thread:$0]  %s185, 512, %s187, %s176, 128, 128, 8
        $region20: #{tpu_custom_call.1} parent=15 // pred_fallthru
          _
        // Predicated region
        $region21: #{tpu_custom_call.1} parent=15 // pred_check
          %p193 = pneg %p69
        $region22: #{tpu_custom_call.1} parent=15 // pred_check_branch
          %195 = sbr.rel (%p193) target = $region24
        $region23: #{tpu_custom_call.1} parent=15 // pred_region
          %s196 = sand.u32 %s59, 1
          %s197 = scalar_lea.sflag [#allocation6], %s196
          %s198 = sand.u32 %s59, 1
          %s199 = smul.addr %s198, 32
          %s200 = scalar_lea.vmem [#allocation5], %s199
          %s202 = ssub.s32 512, 512
          %203 = vsyncadd %s197, %s202
          %s204 = smul.addr %s23, 4
          %s205 = smul.addr %s204, 128
          %s206 = scalar_lea.hbm %s1, %s205
          %s207 = sshll.u32 %s200, 4
          %s208 = int_to_ptr.vmem [resolvable:$true] %s207
          %213 = dma.hbm_to_vmem [thread:$0]  %s206, 512, %s208, %s197, 128, 128, 8
        $region24: #{tpu_custom_call.1} parent=15 // pred_fallthru
          _
      $region16: #{tpu_custom_call.1} parent=5 // pred_fallthru
        _
      %p214 = scmp.le.s32.totalorder 1, %s23
      %p215 = scmp.lt.s32.totalorder %s23, 3
      %p216 = pnand %p214, %p215
      %p217 = pneg %p216
      // Predicated region
      $region25: #{tpu_custom_call.1} parent=5 // pred_check
        _
      $region26: #{tpu_custom_call.1} parent=5 // pred_check_branch
        %219 = sbr.rel (%p216) target = $region28
      $region27: #{tpu_custom_call.1} parent=5 // pred_region
        %s220 = ssub.s32 %s23, 1
        %s221 = sand.u32 %s36, 1
        %s222 = scalar_lea.sflag [#allocation3], %s221
        %s223 = sand.u32 %s36, 1
        %s224 = smul.addr %s223, 32
        %s225 = scalar_lea.vmem [#allocation2], %s224
        // Predicated region
        $region29: #{tpu_custom_call.1} parent=27 // pred_check
          %p226 = pneg %p49
        $region30: #{tpu_custom_call.1} parent=27 // pred_check_branch
          %228 = sbr.rel (%p226) target = $region32
        $region31: #{tpu_custom_call.1} parent=27 // pred_region
          %229 = dma.done %s222, 512
        $region32: #{tpu_custom_call.1} parent=27 // pred_fallthru
          _
        %s230 = sand.u32 %s62, 1
        %s231 = scalar_lea.sflag [#allocation6], %s230
        %s232 = sand.u32 %s62, 1
        %s233 = smul.addr %s232, 32
        %s234 = scalar_lea.vmem [#allocation5], %s233
        // Predicated region
        $region33: #{tpu_custom_call.1} parent=27 // pred_check
          %p235 = pneg %p75
        $region34: #{tpu_custom_call.1} parent=27 // pred_check_branch
          %237 = sbr.rel (%p235) target = $region36
        $region35: #{tpu_custom_call.1} parent=27 // pred_region
          %238 = dma.done %s231, 512
        $region36: #{tpu_custom_call.1} parent=27 // pred_fallthru
          _
        %s239 = sand.u32 %s36, 1
        %s240 = scalar_lea.sflag [#allocation3], %s239
        %s241 = sand.u32 %s36, 1
        %s242 = smul.addr %s241, 32
        %s243 = scalar_lea.vmem [#allocation2], %s242
        %p244 = pneg %p49
        %p245 = pneg %p46
        %s246 = sand.u32 %s62, 1
        %s247 = scalar_lea.sflag [#allocation6], %s246
        %s248 = sand.u32 %s62, 1
        %s249 = smul.addr %s248, 32
        %s250 = scalar_lea.vmem [#allocation5], %s249
        %p251 = pneg %p75
        %p252 = pneg %p72
        %p253 = pneg %p101
        %p254 = pneg %p98
        %p255 = scmp.lt.s32.totalorder %s28, 1
        %s256 = scalar_select %p255, %s28, 1
        %s257 = smul.addr %s256, 8
        %s258 = smul.addr %s257, 8
        %s259 = scalar_lea.vmem %s2, %s258
        %p260 = pneg %p127
        %p261 = pneg %p124
        %s262 = sand.u32 %s114, 1
        %s263 = scalar_lea.sflag [#allocation4], %s262
        %s264 = sand.u32 %s114, 1
        %s265 = smul.addr %s264, 32
        %s266 = scalar_lea.vmem [#allocation7], %s265
        %p267 = pneg %p153
        %p268 = pneg %p150
        %s269 = sand.u32 %s140, 1
        %s270 = scalar_lea.sflag [#allocation9], %s269
        %s271 = sand.u32 %s140, 1
        %s272 = smul.addr %s271, 64
        %s273 = scalar_lea.vmem [#allocation8], %s272
        %p274 = scmp.lt.s32.totalorder %s28, 1
        %s275 = scalar_select %p274, %s28, 1
        %s276 = smul.addr %s275, 8
        %s277 = smul.addr %s276, 8
        %s278 = scalar_lea.vmem %s2, %s277
        %v279 = vld [vmem:[%s225] sm:$0xff]
        %v280 = vld [vmem:[%s225 + $0x8] sm:$0xff]
        %v281 = vld [vmem:[%s225 + $0x10] sm:$0xff]
        %v282 = vld [vmem:[%s225 + $0x18] sm:$0xff]
        %v283 = vld [vmem:[%s234] sm:$0xff]
        %v284 = vld [vmem:[%s234 + $0x8] sm:$0xff]
        %v285 = vld [vmem:[%s234 + $0x10] sm:$0xff]
        %v286 = vld [vmem:[%s234 + $0x18] sm:$0xff]
        %v287 = vmul.f32 %v279, %v279
        %v288 = vmul.f32 %v280, %v280
        %v289 = vmul.f32 %v281, %v281
        %v290 = vmul.f32 %v282, %v282
        %vm291 = vcmask 523264
        %v292 = vsel %vm291, %v287, 0.0
        %v293 = vsel %vm291, %v288, 0.0
        %v294 = vadd.f32 %v292, %v293
        %v295 = vsel %vm291, %v289, 0.0
        %v296 = vadd.f32 %v294, %v295
        %v297 = vsel %vm291, %v290, 0.0
        %v298 = vadd.f32 %v296, %v297
        %v299 = vrot.slane %v298, 4
        %v300 = vadd.f32 %v298, %v299
        %v301 = vrot.slane %v300, 2
        %v302 = vadd.f32 %v300, %v301
        %v303 = vrot.slane %v302, 1
        %v304 = vadd.f32 %v302, %v303
        %v305 = vrsqrt.pop %v304
        %v306 = vmul.f32 %v304, %v305
        %vm307 = vcmp.eq.f32.partialorder %v304, inf
        %v308 = vsel %vm307, %v304, %v306
        %vm309 = vcmp.eq.f32.partialorder %v304, 0.0
        %v310 = vand.u32 %v304, 2147483648
        %v311 = vsel %vm309, %v310, %v308
        %v312 = vmax.f32 %v311, 1e-12
        %v313 = vrcp.pop %v312
        %v314 = vmul.f32 1.0, %v313
        %v315 = vmul.f32 %v283, %v283
        %v316 = vmul.f32 %v284, %v284
        %v317 = vmul.f32 %v285, %v285
        %v318 = vmul.f32 %v286, %v286
        %v319 = vsel %vm291, %v315, 0.0
        %v320 = vsel %vm291, %v316, 0.0
        %v321 = vadd.f32 %v319, %v320
        %v322 = vsel %vm291, %v317, 0.0
        %v323 = vadd.f32 %v321, %v322
        %v324 = vsel %vm291, %v318, 0.0
        %v325 = vadd.f32 %v323, %v324
        %v326 = vrot.slane %v325, 4
        %v327 = vadd.f32 %v325, %v326
        %v328 = vrot.slane %v327, 2
        %v329 = vadd.f32 %v327, %v328
        %v330 = vrot.slane %v329, 1
        %v331 = vadd.f32 %v329, %v330
        %v332 = vrsqrt.pop %v331
        %v333 = vmul.f32 %v331, %v332
        %vm334 = vcmp.eq.f32.partialorder %v331, inf
        %v335 = vsel %vm334, %v331, %v333
        %vm336 = vcmp.eq.f32.partialorder %v331, 0.0
        %v337 = vand.u32 %v331, 2147483648
        %v338 = vsel %vm336, %v337, %v335
        %v339 = vmax.f32 %v338, 1e-12
        %v340 = vrcp.pop %v339
        %v341 = vmul.f32 1.0, %v340
        %v342 = vmul.f32 %v279, %v314
        %v343 = vmul.f32 %v280, %v314
        %v344 = vmul.f32 %v281, %v314
        %v345 = vmul.f32 %v282, %v314
        %346 = vxpose.xlu0.b32.start [1/16] %v342, 128
        %347 = vxpose.xlu0.b32.cont [2/16] %v343, 128
        %348 = vxpose.xlu0.b32.cont [3/16] %v344, 128
        %349 = vxpose.xlu0.b32.cont [4/16] %v345, 128
        %350 = vxpose.xlu0.b32.cont [5/16] 0.0, 128
        %351 = vxpose.xlu0.b32.cont [6/16] 0.0, 128
        %352 = vxpose.xlu0.b32.cont [7/16] 0.0, 128
        %353 = vxpose.xlu0.b32.cont [8/16] 0.0, 128
        %354 = vxpose.xlu0.b32.cont [9/16] 0.0, 128
        %355 = vxpose.xlu0.b32.cont [10/16] 0.0, 128
        %356 = vxpose.xlu0.b32.cont [11/16] 0.0, 128
        %357 = vxpose.xlu0.b32.cont [12/16] 0.0, 128
        %358 = vxpose.xlu0.b32.cont [13/16] 0.0, 128
        %359 = vxpose.xlu0.b32.cont [14/16] 0.0, 128
        %360 = vxpose.xlu0.b32.cont [15/16] 0.0, 128
        %361 = vxpose.xlu0.b32.end [16/16] 0.0, 128
        %v362 = vpop.trf.xlu0
        %v363 = vpop.trf.xlu0
        %v364 = vpop.trf.xlu0
        %v365 = vpop.trf.xlu0
        %v366 = vpop.trf.xlu0
        %v367 = vpop.trf.xlu0
        %v368 = vpop.trf.xlu0
        %v369 = vpop.trf.xlu0
        %v370 = vpop.trf.xlu0
        %v371 = vpop.trf.xlu0
        %v372 = vpop.trf.xlu0
        %v373 = vpop.trf.xlu0
        %v374 = vpop.trf.xlu0
        %v375 = vpop.trf.xlu0
        %v376 = vpop.trf.xlu0
        %v377 = vpop.trf.xlu0
        %v378 = vmul.f32 %v283, %v341
        %v379 = vmul.f32 %v284, %v341
        %v380 = vmul.f32 %v285, %v341
        %v381 = vmul.f32 %v286, %v341
        %vm382 = vcmask 261120
        %383 = vst.msk [vmem:[%s278] sm:$0xff] %vm382, %v362
        %384 = vst.msk [vmem:[%s278 + $0x8] sm:$0xff] %vm382, %v363
        %385 = vst.msk [vmem:[%s278 + $0x10] sm:$0xff] %vm382, %v364
        %386 = vst.msk [vmem:[%s278 + $0x18] sm:$0xff] %vm382, %v365
        %387 = vst.msk [vmem:[%s278 + $0x20] sm:$0xff] %vm382, %v366
        %388 = vst.msk [vmem:[%s278 + $0x28] sm:$0xff] %vm382, %v367
        %389 = vst.msk [vmem:[%s278 + $0x30] sm:$0xff] %vm382, %v368
        %390 = vst.msk [vmem:[%s278 + $0x38] sm:$0xff] %vm382, %v369
        %391 = vst.msk [vmem:[%s266] sm:$0xff] %vm291, %v378
        %392 = vst.msk [vmem:[%s266 + $0x8] sm:$0xff] %vm291, %v379
        %393 = vst.msk [vmem:[%s266 + $0x10] sm:$0xff] %vm291, %v380
        %394 = vst.msk [vmem:[%s266 + $0x18] sm:$0xff] %vm291, %v381
        %v396 = vsel %vm382, %v362, 0
        %v399 = vsel %vm382, %v363, 0
        %v402 = vsel %vm382, %v364, 0
        %v405 = vsel %vm382, %v365, 0
        %v408 = vsel %vm382, %v366, 0
        %v411 = vsel %vm382, %v367, 0
        %v414 = vsel %vm382, %v368, 0
        %v417 = vsel %vm382, %v369, 0
        %419 = vmatprep.subr.mxu0 0.0
        %420 = vmatpush1.msra.mxu0 %v378
        %421 = vmatprep.subr.mxu0 0.0
        %422 = vmatpush1.msra.mxu0 %v379
        %423 = vmatprep.subr.mxu0 0.0
        %424 = vmatpush1.msra.mxu0 %v380
        %425 = vmatprep.subr.mxu0 0.0
        %426 = vmatpush1.msra.mxu0 %v381
        %427 = vmatprep.subr.mxu0 0.0
        %428 = vmatpush1.msra.mxu0 0.0
        %429 = vmatprep.subr.mxu0 0.0
        %430 = vmatpush1.msra.mxu0 0.0
        %431 = vmatprep.subr.mxu0 0.0
        %432 = vmatpush1.msra.mxu0 0.0
        %433 = vmatprep.subr.mxu0 0.0
        %434 = vmatpush1.msra.mxu0 0.0
        %435 = vmatprep.subr.mxu0 0.0
        %436 = vmatpush1.msra.mxu0 0.0
        %437 = vmatprep.subr.mxu0 0.0
        %438 = vmatpush1.msra.mxu0 0.0
        %439 = vmatprep.subr.mxu0 0.0
        %440 = vmatpush1.msra.mxu0 0.0
        %441 = vmatprep.subr.mxu0 0.0
        %442 = vmatpush1.msra.mxu0 0.0
        %443 = vmatprep.subr.mxu0 0.0
        %444 = vmatpush1.msra.mxu0 0.0
        %445 = vmatprep.subr.mxu0 0.0
        %446 = vmatpush1.msra.mxu0 0.0
        %447 = vmatprep.subr.mxu0 0.0
        %448 = vmatpush1.msra.mxu0 0.0
        %449 = vmatprep.subr.mxu0 0.0
        %450 = vmatpush1.msra.mxu0 0.0
        %451 = vmatprep.subr.mxu0 0.0
        %452 = vmatpush1.msra.mxu0 0.0
        %453 = vmatprep.subr.mxu0 0.0
        %454 = vmatpush1.msra.mxu0 0.0
        %455 = vmatprep.subr.mxu0 0.0
        %456 = vmatpush1.msra.mxu0 0.0
        %457 = vmatprep.subr.mxu0 0.0
        %458 = vmatpush1.msra.mxu0 0.0
        %459 = vmatprep.subr.mxu0 0.0
        %460 = vmatpush1.msra.mxu0 0.0
        %461 = vmatprep.subr.mxu0 0.0
        %462 = vmatpush1.msra.mxu0 0.0
        %463 = vmatprep.subr.mxu0 0.0
        %464 = vmatpush1.msra.mxu0 0.0
        %465 = vmatprep.subr.mxu0 0.0
        %466 = vmatpush1.msra.mxu0 0.0
        %467 = vmatprep.subr.mxu0 0.0
        %468 = vmatpush1.msra.mxu0 0.0
        %469 = vmatprep.subr.mxu0 0.0
        %470 = vmatpush1.msra.mxu0 0.0
        %471 = vmatprep.subr.mxu0 0.0
        %472 = vmatpush1.msra.mxu0 0.0
        %473 = vmatprep.subr.mxu0 0.0
        %474 = vmatpush1.msra.mxu0 0.0
        %475 = vmatprep.subr.mxu0 0.0
        %476 = vmatpush1.msra.mxu0 0.0
        %477 = vmatprep.subr.mxu0 0.0
        %478 = vmatpush1.msra.mxu0 0.0
        %479 = vmatprep.subr.mxu0 0.0
        %480 = vmatpush1.msra.mxu0 0.0
        %481 = vmatprep.subr.mxu0 0.0
        %482 = vmatpush1.msra.mxu0 0.0
        %483 = vmatprep.mubr.f32.mxu0 0.0
        %484 = vmatmul.mubr.f32.gmra.mrb[0].mxu0 %v396
        %v485 = vpop.f32.mrb[0].mxu0
        %v486 = vadd.f32 0.0, %v485
        %v487 = vpop.f32.mrb[0].mxu0
        %488 = vmatprep.mubr.f32.mxu0 0.0
        %489 = vmatmul.mubr.f32.gmra.mrb[0].mxu0 %v399
        %v490 = vpop.f32.mrb[0].mxu0
        %v491 = vadd.f32 0.0, %v490
        %v492 = vpop.f32.mrb[0].mxu0
        %493 = vmatprep.mubr.f32.mxu0 0.0
        %494 = vmatmul.mubr.f32.gmra.mrb[0].mxu0 %v402
        %v495 = vpop.f32.mrb[0].mxu0
        %v496 = vadd.f32 0.0, %v495
        %v497 = vpop.f32.mrb[0].mxu0
        %498 = vmatprep.mubr.f32.mxu0 0.0
        %499 = vmatmul.mubr.f32.gmra.mrb[0].mxu0 %v405
        %v500 = vpop.f32.mrb[0].mxu0
        %v501 = vadd.f32 0.0, %v500
        %v502 = vpop.f32.mrb[0].mxu0
        %503 = vmatprep.mubr.f32.mxu0 0.0
        %504 = vmatmul.mubr.f32.gmra.mrb[0].mxu0 %v408
        %v505 = vpop.f32.mrb[0].mxu0
        %v506 = vadd.f32 0.0, %v505
        %v507 = vpop.f32.mrb[0].mxu0
        %508 = vmatprep.mubr.f32.mxu0 0.0
        %509 = vmatmul.mubr.f32.gmra.mrb[0].mxu0 %v411
        %v510 = vpop.f32.mrb[0].mxu0
        %v511 = vadd.f32 0.0, %v510
        %v512 = vpop.f32.mrb[0].mxu0
        %513 = vmatprep.mubr.f32.mxu0 0.0
        %514 = vmatmul.mubr.f32.gmra.mrb[0].mxu0 %v414
        %v515 = vpop.f32.mrb[0].mxu0
        %v516 = vadd.f32 0.0, %v515
        %v517 = vpop.f32.mrb[0].mxu0
        %518 = vmatprep.mubr.f32.mxu0 0.0
        %519 = vmatmul.mubr.f32.gmra.mrb[0].mxu0 %v417
        %v520 = vpop.f32.mrb[0].mxu0
        %v521 = vadd.f32 0.0, %v520
        %v522 = vpop.f32.mrb[0].mxu0
        %523 = vdwg.mxu0
        %524 = vst.msk [vmem:[%s273] sm:$0xff] %vm291, %v486
        %525 = vst.msk [vmem:[%s273 + $0x8] sm:$0xff] %vm291, %v491
        %526 = vst.msk [vmem:[%s273 + $0x10] sm:$0xff] %vm291, %v496
        %527 = vst.msk [vmem:[%s273 + $0x18] sm:$0xff] %vm291, %v501
        %528 = vst.msk [vmem:[%s273 + $0x20] sm:$0xff] %vm291, %v506
        %529 = vst.msk [vmem:[%s273 + $0x28] sm:$0xff] %vm291, %v511
        %530 = vst.msk [vmem:[%s273 + $0x30] sm:$0xff] %vm291, %v516
        %531 = vst.msk [vmem:[%s273 + $0x38] sm:$0xff] %vm291, %v521
        %p532 = scmp.lt.s32.totalorder %s28, 1
        %s533 = scalar_select %p532, %s28, 1
        %s534 = smul.addr %s533, 8
        %s535 = smul.addr %s534, 8
        %s536 = scalar_lea.vmem %s2, %s535
        %s537 = sand.u32 %s114, 1
        %s538 = scalar_lea.sflag [#allocation4], %s537
        %s539 = sand.u32 %s114, 1
        %s540 = smul.addr %s539, 32
        %s541 = scalar_lea.vmem [#allocation7], %s540
        %s542 = sand.u32 %s140, 1
        %s543 = scalar_lea.sflag [#allocation9], %s542
        %s544 = sand.u32 %s140, 1
        %s545 = smul.addr %s544, 64
        %s546 = scalar_lea.vmem [#allocation8], %s545
        // Predicated region
        $region37: #{tpu_custom_call.1} parent=27 // pred_check
          %p547 = pneg %p98
        $region38: #{tpu_custom_call.1} parent=27 // pred_check_branch
          %549 = sbr.rel (%p547) target = $region40
        $region39: #{tpu_custom_call.1} parent=27 // pred_region
          _
        $region40: #{tpu_custom_call.1} parent=27 // pred_fallthru
          _
        // Predicated region
        $region41: #{tpu_custom_call.1} parent=27 // pred_check
          %p550 = pneg %p124
        $region42: #{tpu_custom_call.1} parent=27 // pred_check_branch
          %552 = sbr.rel (%p550) target = $region44
        $region43: #{tpu_custom_call.1} parent=27 // pred_region
          %s554 = ssub.s32 512, 512
          %555 = vsyncadd %s538, %s554
          %s556 = smul.addr %s28, 4
          %s557 = smul.addr %s556, 128
          %s558 = scalar_lea.hbm %s3, %s557
          %s559 = sshll.u32 %s541, 4
          %s560 = int_to_ptr.vmem [resolvable:$true] %s559
          %565 = dma.vmem_to_hbm [thread:$0]  %s560, 512, %s558, %s538, 128, 128, 8
        $region44: #{tpu_custom_call.1} parent=27 // pred_fallthru
          _
        // Predicated region
        $region45: #{tpu_custom_call.1} parent=27 // pred_check
          %p566 = pneg %p150
        $region46: #{tpu_custom_call.1} parent=27 // pred_check_branch
          %568 = sbr.rel (%p566) target = $region48
        $region47: #{tpu_custom_call.1} parent=27 // pred_region
          %s570 = ssub.s32 1024, 1024
          %571 = vsyncadd %s543, %s570
          %s572 = smul.addr %s28, 8
          %s573 = smul.addr %s572, 128
          %s574 = scalar_lea.hbm %s4, %s573
          %s575 = sshll.u32 %s546, 4
          %s576 = int_to_ptr.vmem [resolvable:$true] %s575
          %581 = dma.vmem_to_hbm [thread:$0]  %s576, 1024, %s574, %s543, 128, 128, 8
        $region48: #{tpu_custom_call.1} parent=27 // pred_fallthru
          _
      $region28: #{tpu_custom_call.1} parent=5 // pred_fallthru
        _
      %p582 = scmp.le.s32.totalorder 2, %s23
      // Predicated region
      $region49: #{tpu_custom_call.1} parent=5 // pred_check
        %p583 = pneg %p582
      $region50: #{tpu_custom_call.1} parent=5 // pred_check_branch
        %585 = sbr.rel (%p583) target = $region52
      $region51: #{tpu_custom_call.1} parent=5 // pred_region
        %s586 = ssub.s32 %s23, 2
        // Predicated region
        $region53: #{tpu_custom_call.1} parent=51 // pred_check
          %p587 = pneg %p104
        $region54: #{tpu_custom_call.1} parent=51 // pred_check_branch
          %589 = sbr.rel (%p587) target = $region56
        $region55: #{tpu_custom_call.1} parent=51 // pred_region
          %p590 = scmp.lt.s32.totalorder %s29, 1
          %s591 = scalar_select %p590, %s29, 1
          %s592 = smul.addr %s591, 8
          %s593 = smul.addr %s592, 8
          %s594 = scalar_lea.vmem %s2, %s593
        $region56: #{tpu_custom_call.1} parent=51 // pred_fallthru
          _
        // Predicated region
        $region57: #{tpu_custom_call.1} parent=51 // pred_check
          %p595 = pneg %p130
        $region58: #{tpu_custom_call.1} parent=51 // pred_check_branch
          %597 = sbr.rel (%p595) target = $region60
        $region59: #{tpu_custom_call.1} parent=51 // pred_region
          %s598 = sand.u32 %s115, 1
          %s599 = scalar_lea.sflag [#allocation4], %s598
          %s600 = sand.u32 %s115, 1
          %s601 = smul.addr %s600, 32
          %s602 = scalar_lea.vmem [#allocation7], %s601
          %603 = dma.done %s599, 512
        $region60: #{tpu_custom_call.1} parent=51 // pred_fallthru
          _
        // Predicated region
        $region61: #{tpu_custom_call.1} parent=51 // pred_check
          %p604 = pneg %p156
        $region62: #{tpu_custom_call.1} parent=51 // pred_check_branch
          %606 = sbr.rel (%p604) target = $region64
        $region63: #{tpu_custom_call.1} parent=51 // pred_region
          %s607 = sand.u32 %s141, 1
          %s608 = scalar_lea.sflag [#allocation9], %s607
          %s609 = sand.u32 %s141, 1
          %s610 = smul.addr %s609, 64
          %s611 = scalar_lea.vmem [#allocation8], %s610
          %612 = dma.done %s608, 1024
        $region64: #{tpu_custom_call.1} parent=51 // pred_fallthru
          _
      $region52: #{tpu_custom_call.1} parent=5 // pred_fallthru
        _
    $region6: #{tpu_custom_call.1} parent=1 // loop_footer
      %s27 = sadd.s32 1, %s23
    $region7: #{tpu_custom_call.1} parent=1 // loop_footer_branch
      %22 = sbr.rel target = $region3
    $region8: #{tpu_custom_call.1} parent=1 // loop_exit
      _
    %613 = vsyncpa [#allocation3], 1
    %s614 = scalar_lea.sflag [#allocation3], 1
    %615 = vsyncpa %s614, 1
    %616 = vsyncpa [#allocation6], 1
    %s617 = scalar_lea.sflag [#allocation6], 1
    %618 = vsyncpa %s617, 1
    %619 = vsyncpa [#allocation4], 1
    %s620 = scalar_lea.sflag [#allocation4], 1
    %621 = vsyncpa %s620, 1
    %622 = vsyncpa [#allocation9], 1
    %s623 = scalar_lea.sflag [#allocation9], 1
    %624 = vsyncpa %s623, 1

</llo_original>
